<compile_context>
chip_gen: v6e
topology: v6e:2x2x1
jax: 0.10.0
libtpu: 0.0.40
codegen_flags: <defaults>
</compile_context>

<pallas_src>
import jax
import jax.numpy as jnp
from jax.experimental import pallas as pl
from jax.experimental.pallas import tpu as pltpu

_LANE_WIDTH = 1024      # lane-dense last dim (multiple of 128)
_MAX_ROW_BLOCK = 256    # 256 x 1024 x 4B = 1 MiB per block buffer


def _exp_kernel(x_ref, o_ref):
    # Elementwise exp on the EUP; whole-tile load/compute/store.
    o_ref[...] = jnp.exp(x_ref[...])


def bias_field_exp_pallas(x):
    """Elementwise exp(x) via a lane-dense, row-tiled Pallas kernel."""
    orig_shape = x.shape
    orig_dtype = x.dtype
    n = x.size

    xf = x.reshape(-1).astype(jnp.float32)

    cols = _LANE_WIDTH
    rows = -(-n // cols)                       # ceil-div
    rows8 = -(-rows // 8) * 8                  # sublane multiple
    row_block = min(_MAX_ROW_BLOCK, rows8)
    rows_padded = -(-rows8 // row_block) * row_block

    pad = rows_padded * cols - n
    if pad:
        xf = jnp.pad(xf, (0, pad))             # exp(0)=1 in padding; sliced off below
    x2 = xf.reshape(rows_padded, cols)

    out = pl.pallas_call(
        _exp_kernel,
        out_shape=jax.ShapeDtypeStruct((rows_padded, cols), jnp.float32),
        grid_spec=pltpu.PrefetchScalarGridSpec(
            num_scalar_prefetch=0,
            grid=(rows_padded // row_block,),
            in_specs=[pl.BlockSpec((row_block, cols), lambda i: (i, 0))],
            out_specs=pl.BlockSpec((row_block, cols), lambda i: (i, 0)),
        ),
        compiler_params=pltpu.CompilerParams(
            dimension_semantics=("parallel",),
        ),
    )(x2)

    return out.reshape(-1)[:n].reshape(orig_shape).astype(orig_dtype)


class BFProcessorPallas:
    """Pallas re-implementation of BFProcessor.forward."""

    def __call__(self, outputs, *kwargs):
        for output in outputs:
            output['bias_field'] = bias_field_exp_pallas(output['bias_field_log'])
        return outputs


if __name__ == "__main__":
    key = jax.random.PRNGKey(0)
    k1, k2 = jax.random.split(key)

    B, C, D, H, W = 2, 1, 16, 16, 16
    outputs = [
        {'bias_field_log': 0.3 * jax.random.normal(k1, (B, C, D, H, W), jnp.float32)},
        {'bias_field_log': 0.3 * jax.random.normal(k2, (B, C, D, H, W), jnp.float32)},
    ]

    proc = BFProcessorPallas()
    outs = proc(outputs)

    ok = True
    for o in outs:
        bf = jax.block_until_ready(o['bias_field'])
        ref = jnp.exp(o['bias_field_log'])
        ok = ok and bf.shape == o['bias_field_log'].shape
        ok = ok and bool(jnp.allclose(bf, ref, atol=1e-6, rtol=1e-6))
    assert ok

    print("KERNEL_OK")
</pallas_src>

<mosaic_0001>
module attributes {stable_mosaic.version = 11 : i64} {
  func.func @_exp_kernel(%arg0: i32, %arg1: memref<8x1024xf32, #tpu.memory_space<vmem>>, %arg2: memref<8x1024xf32, #tpu.memory_space<vmem>>) attributes {dimension_semantics = [#tpu.dimension_semantics<parallel>], iteration_bounds = array<i64: 1>, scalar_prefetch = 0 : i64, scratch_operands = 0 : i64, tpu.core_type = #tpu.core_type<tc>, window_params = [{transform_indices = @transform_0, window_bounds = array<i64: 8, 1024>}, {transform_indices = @transform_1, window_bounds = array<i64: 8, 1024>}]} {
    %c0 = arith.constant 0 : index
    %c0_0 = arith.constant 0 : index
    %0 = vector.load %arg1[%c0, %c0_0] : memref<8x1024xf32, #tpu.memory_space<vmem>>, vector<8x1024xf32>
    %1 = math.exp %0 : vector<8x1024xf32>
    %c0_1 = arith.constant 0 : index
    %c0_2 = arith.constant 0 : index
    %2 = vector.load %arg2[%c0_1, %c0_2] : memref<8x1024xf32, #tpu.memory_space<vmem>>, vector<8x1024xf32>
    tpu.vector_store %arg2[%c0_1, %c0_2], %1 {strides = array<i32>} : memref<8x1024xf32, #tpu.memory_space<vmem>>, vector<8x1024xf32>,
    return
  }
  func.func @transform_0(%arg0: i32) -> (i32, i32) {
    %c0_i32 = arith.constant 0 : i32
    %c0_i32_0 = arith.constant 0 : i32
    return %arg0, %c0_i32 : i32, i32
  }
  func.func @transform_1(%arg0: i32) -> (i32, i32) {
    %c0_i32 = arith.constant 0 : i32
    %c0_i32_0 = arith.constant 0 : i32
    return %arg0, %c0_i32 : i32, i32
  }
}

</mosaic_0001>

<llo_original>
// kernel: tpu_custom_call.1
$region0: #{tpu_custom_call.1}
  #allocation0 [shape = 'u32[]', space=smem, size = 0x4, offset = 0x4, fixed_abs, tag = 'smem constant byte address 0x4 - core index']
  #allocation1 [shape = 'u32[144,128]{1,0:T(1,128)}', space=vmem, size = 0x12000, scoped, tag = 'internal scratch']
  %s0 = inlined_call_operand.hbm [shape: f32[8,1024], index: 0, kind: input, shape index: {}]
  %s1 = inlined_call_operand.hbm [shape: f32[8,1024], index: 1, kind: output, shape index: {}]
  %s2 = sld [smem:[#allocation0]]
  $region18: #{tpu_custom_call.1} parent=0
    _
  %s4 = ssub.s32 1, %s2
  %s5 = scalar_select 0, %s4, %s2
  $region1: #{tpu_custom_call.1} parent=0
    #allocation2 [shape = 'u8[32768]{0}', space=vmem, size = 0x8000, scoped, tag = 'input window, operand 0, single buffered']
    #allocation3 [shape = 's32[1]{0}', space=sflag, size = 0x4, scoped, tag = 'scoped memory for tpu_custom_call.1']
    #allocation4 [shape = 's32[1]{0}', space=sflag, size = 0x4, scoped, tag = 'scoped memory for tpu_custom_call.1']
    #allocation5 [shape = 'u8[32768]{0}', space=vmem, size = 0x8000, scoped, tag = 'output window, operand 0, single buffered']
    %6 = vsyncpa [#allocation3], 0
    %7 = vsyncpa [#allocation4], 0
    // Predicated region
    $region2: #{tpu_custom_call.1} parent=1 // pred_check
      _
    $region3: #{tpu_custom_call.1} parent=1 // pred_check_branch
      %9 = sbr.rel (0) target = $region5
    $region4: #{tpu_custom_call.1} parent=1 // pred_region
      %s11 = ssub.s32 1024, 1024
      %12 = vsyncadd [#allocation3], %s11
      %s14 = sshll.u32 [#allocation2], 4
      %s15 = int_to_ptr.vmem [resolvable:$true] %s14
      %17 = dma.hbm_to_vmem [thread:$0]  %s0, 1024, %s15, [#allocation3]
    $region5: #{tpu_custom_call.1} parent=1 // pred_fallthru
      _
    // Predicated region
    $region6: #{tpu_custom_call.1} parent=1 // pred_check
      _
    $region7: #{tpu_custom_call.1} parent=1 // pred_check_branch
      %19 = sbr.rel (0) target = $region9
    $region8: #{tpu_custom_call.1} parent=1 // pred_region
      %20 = dma.done [#allocation3], 1024
    $region9: #{tpu_custom_call.1} parent=1 // pred_fallthru
      _
    %v21 = vld [vmem:[#allocation2] sm:$0xff]
    %v22 = vld [vmem:[#allocation2 + $0x8] sm:$0xff]
    %v23 = vld [vmem:[#allocation2 + $0x10] sm:$0xff]
    %v24 = vld [vmem:[#allocation2 + $0x18] sm:$0xff]
    %v25 = vld [vmem:[#allocation2 + $0x20] sm:$0xff]
    %v26 = vld [vmem:[#allocation2 + $0x28] sm:$0xff]
    %v27 = vld [vmem:[#allocation2 + $0x30] sm:$0xff]
    %v28 = vld [vmem:[#allocation2 + $0x38] sm:$0xff]
    %v29 = vmul.f32 %v21, 1.442695
    %v30 = vpow.pop %v29
    %v31 = vmul.f32 %v22, 1.442695
    %v32 = vpow.pop %v31
    %v33 = vmul.f32 %v23, 1.442695
    %v34 = vpow.pop %v33
    %v35 = vmul.f32 %v24, 1.442695
    %v36 = vpow.pop %v35
    %v37 = vmul.f32 %v25, 1.442695
    %v38 = vpow.pop %v37
    %v39 = vmul.f32 %v26, 1.442695
    %v40 = vpow.pop %v39
    %v41 = vmul.f32 %v27, 1.442695
    %v42 = vpow.pop %v41
    %v43 = vmul.f32 %v28, 1.442695
    %v44 = vpow.pop %v43
    %45 = vst [vmem:[#allocation5] sm:$0xff] %v30
    %46 = vst [vmem:[#allocation5 + $0x8] sm:$0xff] %v32
    %47 = vst [vmem:[#allocation5 + $0x10] sm:$0xff] %v34
    %48 = vst [vmem:[#allocation5 + $0x18] sm:$0xff] %v36
    %49 = vst [vmem:[#allocation5 + $0x20] sm:$0xff] %v38
    %50 = vst [vmem:[#allocation5 + $0x28] sm:$0xff] %v40
    %51 = vst [vmem:[#allocation5 + $0x30] sm:$0xff] %v42
    %52 = vst [vmem:[#allocation5 + $0x38] sm:$0xff] %v44
    // Predicated region
    $region10: #{tpu_custom_call.1} parent=1 // pred_check
      _
    $region11: #{tpu_custom_call.1} parent=1 // pred_check_branch
      %54 = sbr.rel (0) target = $region13
    $region12: #{tpu_custom_call.1} parent=1 // pred_region
      %s56 = ssub.s32 1024, 1024
      %57 = vsyncadd [#allocation4], %s56
      %s59 = sshll.u32 [#allocation5], 4
      %s60 = int_to_ptr.vmem [resolvable:$true] %s59
      %62 = dma.vmem_to_hbm [thread:$0]  %s60, 1024, %s1, [#allocation4]
    $region13: #{tpu_custom_call.1} parent=1 // pred_fallthru
      _
    // Predicated region
    $region14: #{tpu_custom_call.1} parent=1 // pred_check
      _
    $region15: #{tpu_custom_call.1} parent=1 // pred_check_branch
      %64 = sbr.rel (0) target = $region17
    $region16: #{tpu_custom_call.1} parent=1 // pred_region
      %65 = dma.done [#allocation4], 1024
    $region17: #{tpu_custom_call.1} parent=1 // pred_fallthru
      _
    %66 = vsyncpa [#allocation3], 1
    %67 = vsyncpa [#allocation4], 1

</llo_original>
